<compile_context>
chip_gen: v5e
topology: v5e:2x2
jax: 0.10.0
libtpu: 0.0.40
codegen_flags: <defaults>
</compile_context>

<pallas_src>
import jax
import jax.numpy as jnp
from jax import lax
from jax.experimental import pallas as pl
from jax.experimental.pallas import tpu as pltpu

_VMEM_SPEC = pl.BlockSpec(memory_space=pltpu.MemorySpace.VMEM)

_TAPS = [(ky, kx) for ky in (-1, 0, 1) for kx in (-1, 0, 1)]  # matches OIHW weight order


# -----------------------------------------------------------------------------
# Fused kernel: ResDoubleConv2D (conv-sigmoid, conv-sigmoid, residual) + Linear
# -----------------------------------------------------------------------------
def _make_fused_kernel(B, C, H, W, z_dim):
    HW = H * W
    R = B * C

    def kernel(x_ref, wb1_ref, b1_ref, wb2_ref, b2_ref,
               mask9_ref, wstack_ref, zmask_ref, sel_ref, bl_ref, z_ref):
        # x_ref      : (B*C, H*W)       input, row r = b*C + c (== torch.flatten order)
        # wb*_ref    : (B*C, 9*B*C)     block-diagonal tap/channel mixing matrices
        # b*_ref     : (B*C, 1)         per-row conv bias
        # mask9_ref  : (9, H*W)         precomputed edge-validity masks (shared by both convs)
        # wstack_ref : (H*W, C*z_dim)   Linear weight, lane-dense packing
        # zmask_ref  : (B*C, C*z_dim)   keeps each row's own channel block of bot @ wstack
        # sel_ref    : (B, B*C)         per-batch row-sum selector
        # bl_ref     : (1, z_dim)
        # z_ref      : (B, z_dim)

        # Hoisted once: per-tap edge masks (identical for conv1 and conv2).
        masks = [None if (ky == 0 and kx == 0) else mask9_ref[t:t + 1, :]
                 for t, (ky, kx) in enumerate(_TAPS)]

        def conv3x3_sigmoid(inp, wbig, brow):
            # Build the 9 shifted + edge-masked taps fully in registers (no scratch,
            # no store->load round trip) and feed one (B*C, 9*B*C) x (9*B*C, H*W) MXU matmul.
            parts = []
            for t, (ky, kx) in enumerate(_TAPS):
                d = ky * W + kx
                if d == 0:
                    parts.append(inp)                       # center tap, always valid
                else:
                    shifted = pltpu.roll(inp, (-d) % HW, axis=1)   # out[:,p] = inp[:,(p+d)%HW]
                    parts.append(shifted * masks[t])        # kill wrapped / out-of-image taps
            tap_slab = jnp.concatenate(parts, axis=0)       # (9*B*C, H*W), value (vregs)
            acc = jnp.dot(wbig, tap_slab, preferred_element_type=jnp.float32)
            return jax.nn.sigmoid(acc + brow)

        x = x_ref[...]                                              # (B*C, H*W)
        h1 = conv3x3_sigmoid(x, wb1_ref[...], b1_ref[...])          # sigmoid(conv1(x))
        bot = x + conv3x3_sigmoid(h1, wb2_ref[...], b2_ref[...])    # x + sigmoid(conv2(h1))

        # to_latent Linear:  z[b, j] = sum_{c,s} bot[b*C+c, s] * wl[j, c*HW+s] + bl[j]
        # One lane-dense matmul (N = C*z_dim = 128), then fold the C groups.
        p = jnp.dot(bot, wstack_ref[...], preferred_element_type=jnp.float32)  # (B*C, C*z_dim)
        q = p * zmask_ref[...]                                                  # keep diag blocks
        rsum = jnp.dot(sel_ref[...], q, preferred_element_type=jnp.float32)     # (B, C*z_dim)
        acc_z = rsum[:, 0:z_dim]
        for c in range(1, C):
            acc_z = acc_z + rsum[:, c * z_dim:(c + 1) * z_dim]
        z_ref[...] = acc_z + bl_ref[...]

    return kernel


# -----------------------------------------------------------------------------
# One-time parameter repacking (hoisted out of the per-forward path)
# -----------------------------------------------------------------------------
def prepare_params(params, batch_size, spatial_hw):
    """Repack PyTorch-layout parameters into kernel-ready arrays (call once).

    Note: the tap-mixing matrices are block-diagonal over the batch, so this prep
    depends on the (static) batch size; the wrapper asserts it at call time.
    """
    w1, b1 = params["w1"], params["b1"]
    w2, b2 = params["w2"], params["b2"]
    wl, bl = params["wl"], params["bl"]
    B = batch_size
    H, W = spatial_hw
    C = w1.shape[0]
    z_dim, hidden = wl.shape
    HW = H * W
    assert hidden == C * HW

    def mix_matrix(w):
        # (Cout, Cin, 3, 3) -> (B*Cout, 9*B*Cin), block-diagonal over the batch.
        cout, cin = w.shape[0], w.shape[1]
        w9 = jnp.transpose(w, (2, 3, 0, 1)).reshape(9, cout, cin)      # [tap, co, ci]
        eye = jnp.eye(B, dtype=w.dtype)
        wb = jnp.einsum("toi,bd->botdi", w9, eye)                      # (B, co, t, b', ci)
        return wb.reshape(B * cout, 9 * B * cin)

    # Per-tap edge-validity masks, (9, HW) f32 (shared by both convs).
    pos = jnp.arange(HW)
    hh, ww = pos // W, pos % W
    mask9 = jnp.stack(
        [(((hh + ky) >= 0) & ((hh + ky) < H) &
          ((ww + kx) >= 0) & ((ww + kx) < W)).astype(jnp.float32)
         for (ky, kx) in _TAPS], axis=0)

    # Linear weight packed lane-dense: wstack[s, c*z_dim + j] = wl[j, c*HW + s]
    wstack = jnp.transpose(wl.reshape(z_dim, C, HW), (2, 1, 0)).reshape(HW, C * z_dim)

    # Block-diagonal column mask: row r keeps only its own channel block (r % C).
    rr = jnp.arange(B * C)[:, None]
    kk = jnp.arange(C * z_dim)[None, :]
    zmask = ((kk // z_dim) == (rr % C)).astype(jnp.float32)

    # Per-batch row-sum selector (B, B*C).
    bb = jnp.arange(B)[:, None]
    sel = ((jnp.arange(B * C)[None, :] // C) == bb).astype(jnp.float32)

    return {
        "wb1": mix_matrix(w1), "b1": jnp.tile(b1, B).reshape(B * C, 1),
        "wb2": mix_matrix(w2), "b2": jnp.tile(b2, B).reshape(B * C, 1),
        "mask9": mask9, "wstack": wstack, "zmask": zmask, "sel": sel,
        "bl": bl.reshape(1, z_dim),
    }


@jax.jit
def bottleneck_ae_forward(x_nchw, prep):
    """Pallas implementation of BottleneckAE.forward.  x: (B, C, H, W) f32."""
    B, C, H, W = x_nchw.shape
    z_dim = prep["bl"].shape[-1]
    # prepare_params bakes the batch size into the block-diagonal mixing matrices.
    assert prep["wb1"].shape[0] == B * C, "prepare_params() was built for a different batch size"
    x2d = x_nchw.reshape(B * C, H * W)   # free reshape; rows already in torch.flatten order

    kernel = _make_fused_kernel(B, C, H, W, z_dim)
    return pl.pallas_call(
        kernel,
        out_shape=jax.ShapeDtypeStruct((B, z_dim), jnp.float32),
        in_specs=[_VMEM_SPEC] * 10,
        out_specs=_VMEM_SPEC,
    )(x2d, prep["wb1"], prep["b1"], prep["wb2"], prep["b2"],
      prep["mask9"], prep["wstack"], prep["zmask"], prep["sel"], prep["bl"])


# -----------------------------------------------------------------------------
# Pure-JAX reference (for correctness check only)
# -----------------------------------------------------------------------------
def _ref_forward(x, params):
    w1, b1, w2, b2, wl, bl = (params["w1"], params["b1"], params["w2"],
                              params["b2"], params["wl"], params["bl"])

    def conv(inp, w):
        return lax.conv_general_dilated(
            inp, w, window_strides=(1, 1), padding=((1, 1), (1, 1)),
            dimension_numbers=("NCHW", "OIHW", "NCHW"))

    h = jax.nn.sigmoid(conv(x, w1) + b1[None, :, None, None])
    h2 = jax.nn.sigmoid(conv(h, w2) + b2[None, :, None, None])
    bot = x + h2
    flat = bot.reshape(x.shape[0], -1)
    return flat @ wl.T + bl


# -----------------------------------------------------------------------------
# Main
# -----------------------------------------------------------------------------
if __name__ == "__main__":
    # lowest_tensor_shape = (C, H, W) = (4, 16, 16), z_dim = 32, batch = 2
    B, C, H, W = 2, 4, 16, 16
    z_dim = 32
    hidden_dim = C * H * W

    key = jax.random.PRNGKey(0)
    k_x, k_w1, k_b1, k_w2, k_b2, k_wl, k_bl = jax.random.split(key, 7)

    x = jax.random.normal(k_x, (B, C, H, W), dtype=jnp.float32)

    params = {
        "w1": jax.random.normal(k_w1, (C, C, 3, 3), jnp.float32) * 0.1,
        "b1": jax.random.normal(k_b1, (C,), jnp.float32) * 0.1,
        "w2": jax.random.normal(k_w2, (C, C, 3, 3), jnp.float32) * 0.1,
        "b2": jax.random.normal(k_b2, (C,), jnp.float32) * 0.1,
        "wl": jax.random.normal(k_wl, (z_dim, hidden_dim), jnp.float32) * 0.02,
        "bl": jax.random.normal(k_bl, (z_dim,), jnp.float32) * 0.02,
    }

    prep = prepare_params(params, batch_size=B, spatial_hw=(H, W))   # one-time repacking
    z = bottleneck_ae_forward(x, prep)
    z = jax.block_until_ready(z)

    z_ref = _ref_forward(x, params)
    assert z.shape == (B, z_dim), z.shape
    assert jnp.allclose(z, z_ref, atol=5e-4, rtol=5e-4), (
        float(jnp.max(jnp.abs(z - z_ref))))

    print("KERNEL_OK")
</pallas_src>

<mosaic_0001>
module attributes {stable_mosaic.version = 11 : i64} {
  func.func @kernel(%arg0: memref<8x256xf32, #tpu.memory_space<vmem>>, %arg1: memref<8x72xf32, #tpu.memory_space<vmem>>, %arg2: memref<8x1xf32, #tpu.memory_space<vmem>>, %arg3: memref<8x72xf32, #tpu.memory_space<vmem>>, %arg4: memref<8x1xf32, #tpu.memory_space<vmem>>, %arg5: memref<9x256xf32, #tpu.memory_space<vmem>>, %arg6: memref<256x128xf32, #tpu.memory_space<vmem>>, %arg7: memref<8x128xf32, #tpu.memory_space<vmem>>, %arg8: memref<2x8xf32, #tpu.memory_space<vmem>>, %arg9: memref<1x32xf32, #tpu.memory_space<vmem>>, %arg10: memref<2x32xf32, #tpu.memory_space<vmem>>) attributes {dimension_semantics = [], scalar_prefetch = 0 : i64, scratch_operands = 0 : i64, tpu.core_type = #tpu.core_type<tc>} {
    %c0 = arith.constant 0 : index
    %c0_0 = arith.constant 0 : index
    %0 = vector.load %arg5[%c0, %c0_0] : memref<9x256xf32, #tpu.memory_space<vmem>>, vector<1x256xf32>
    %c1 = arith.constant 1 : index
    %c0_1 = arith.constant 0 : index
    %1 = vector.load %arg5[%c1, %c0_1] : memref<9x256xf32, #tpu.memory_space<vmem>>, vector<1x256xf32>
    %c2 = arith.constant 2 : index
    %c0_2 = arith.constant 0 : index
    %2 = vector.load %arg5[%c2, %c0_2] : memref<9x256xf32, #tpu.memory_space<vmem>>, vector<1x256xf32>
    %c3 = arith.constant 3 : index
    %c0_3 = arith.constant 0 : index
    %3 = vector.load %arg5[%c3, %c0_3] : memref<9x256xf32, #tpu.memory_space<vmem>>, vector<1x256xf32>
    %c5 = arith.constant 5 : index
    %c0_4 = arith.constant 0 : index
    %4 = vector.load %arg5[%c5, %c0_4] : memref<9x256xf32, #tpu.memory_space<vmem>>, vector<1x256xf32>
    %c6 = arith.constant 6 : index
    %c0_5 = arith.constant 0 : index
    %5 = vector.load %arg5[%c6, %c0_5] : memref<9x256xf32, #tpu.memory_space<vmem>>, vector<1x256xf32>
    %c7 = arith.constant 7 : index
    %c0_6 = arith.constant 0 : index
    %6 = vector.load %arg5[%c7, %c0_6] : memref<9x256xf32, #tpu.memory_space<vmem>>, vector<1x256xf32>
    %c8 = arith.constant 8 : index
    %c0_7 = arith.constant 0 : index
    %7 = vector.load %arg5[%c8, %c0_7] : memref<9x256xf32, #tpu.memory_space<vmem>>, vector<1x256xf32>
    %c0_8 = arith.constant 0 : index
    %c0_9 = arith.constant 0 : index
    %8 = vector.load %arg0[%c0_8, %c0_9] : memref<8x256xf32, #tpu.memory_space<vmem>>, vector<8x256xf32>
    %c0_10 = arith.constant 0 : index
    %c0_11 = arith.constant 0 : index
    %9 = vector.load %arg1[%c0_10, %c0_11] : memref<8x72xf32, #tpu.memory_space<vmem>>, vector<8x72xf32>
    %c0_12 = arith.constant 0 : index
    %c0_13 = arith.constant 0 : index
    %10 = vector.load %arg2[%c0_12, %c0_13] : memref<8x1xf32, #tpu.memory_space<vmem>>, vector<8x1xf32>
    %c17_i32 = arith.constant 17 : i32
    %11 = tpu.dynamic_rotate %8 by %c17_i32 dim 1 : vector<8x256xf32>, i32 -> vector<8x256xf32>
    %12 = vector.broadcast %0 : vector<1x256xf32> to vector<8x256xf32>
    %13 = arith.mulf %11, %12 : vector<8x256xf32>
    %c16_i32 = arith.constant 16 : i32
    %14 = tpu.dynamic_rotate %8 by %c16_i32 dim 1 : vector<8x256xf32>, i32 -> vector<8x256xf32>
    %15 = vector.broadcast %1 : vector<1x256xf32> to vector<8x256xf32>
    %16 = arith.mulf %14, %15 : vector<8x256xf32>
    %c15_i32 = arith.constant 15 : i32
    %17 = tpu.dynamic_rotate %8 by %c15_i32 dim 1 : vector<8x256xf32>, i32 -> vector<8x256xf32>
    %18 = vector.broadcast %2 : vector<1x256xf32> to vector<8x256xf32>
    %19 = arith.mulf %17, %18 : vector<8x256xf32>
    %c1_i32 = arith.constant 1 : i32
    %20 = tpu.dynamic_rotate %8 by %c1_i32 dim 1 : vector<8x256xf32>, i32 -> vector<8x256xf32>
    %21 = vector.broadcast %3 : vector<1x256xf32> to vector<8x256xf32>
    %22 = arith.mulf %20, %21 : vector<8x256xf32>
    %c255_i32 = arith.constant 255 : i32
    %23 = tpu.dynamic_rotate %8 by %c255_i32 dim 1 : vector<8x256xf32>, i32 -> vector<8x256xf32>
    %24 = vector.broadcast %4 : vector<1x256xf32> to vector<8x256xf32>
    %25 = arith.mulf %23, %24 : vector<8x256xf32>
    %c241_i32 = arith.constant 241 : i32
    %26 = tpu.dynamic_rotate %8 by %c241_i32 dim 1 : vector<8x256xf32>, i32 -> vector<8x256xf32>
    %27 = vector.broadcast %5 : vector<1x256xf32> to vector<8x256xf32>
    %28 = arith.mulf %26, %27 : vector<8x256xf32>
    %c240_i32 = arith.constant 240 : i32
    %29 = tpu.dynamic_rotate %8 by %c240_i32 dim 1 : vector<8x256xf32>, i32 -> vector<8x256xf32>
    %30 = vector.broadcast %6 : vector<1x256xf32> to vector<8x256xf32>
    %31 = arith.mulf %29, %30 : vector<8x256xf32>
    %c239_i32 = arith.constant 239 : i32
    %32 = tpu.dynamic_rotate %8 by %c239_i32 dim 1 : vector<8x256xf32>, i32 -> vector<8x256xf32>
    %33 = vector.broadcast %7 : vector<1x256xf32> to vector<8x256xf32>
    %34 = arith.mulf %32, %33 : vector<8x256xf32>
    %35 = tpu.concatenate %13, %16, %19, %22, %8, %25, %28, %31, %34 in 0 : vector<8x256xf32>, vector<8x256xf32>, vector<8x256xf32>, vector<8x256xf32>, vector<8x256xf32>, vector<8x256xf32>, vector<8x256xf32>, vector<8x256xf32>, vector<8x256xf32> -> vector<72x256xf32>
    %cst = arith.constant dense<0.000000e+00> : vector<8x256xf32>
    %36 = tpu.matmul %9, %35, %cst {dimension_numbers = #tpu.dot_dimension_numbers<[1], [0], [0], [1], [0, 0, 1, 1], [], []>} : vector<8x72xf32>, vector<72x256xf32>, vector<8x256xf32> -> vector<8x256xf32>
    %37 = vector.broadcast %10 : vector<8x1xf32> to vector<8x256xf32>
    %38 = arith.addf %36, %37 : vector<8x256xf32>
    %39 = arith.negf %38 : vector<8x256xf32>
    %40 = math.exp %39 : vector<8x256xf32>
    %cst_14 = arith.constant 1.000000e+00 : f32
    %41 = vector.broadcast %cst_14 : f32 to vector<8x256xf32>
    %42 = arith.addf %41, %40 : vector<8x256xf32>
    %43 = arith.divf %41, %42 : vector<8x256xf32>
    %c0_15 = arith.constant 0 : index
    %c0_16 = arith.constant 0 : index
    %44 = vector.load %arg3[%c0_15, %c0_16] : memref<8x72xf32, #tpu.memory_space<vmem>>, vector<8x72xf32>
    %c0_17 = arith.constant 0 : index
    %c0_18 = arith.constant 0 : index
    %45 = vector.load %arg4[%c0_17, %c0_18] : memref<8x1xf32, #tpu.memory_space<vmem>>, vector<8x1xf32>
    %c17_i32_19 = arith.constant 17 : i32
    %46 = tpu.dynamic_rotate %43 by %c17_i32_19 dim 1 : vector<8x256xf32>, i32 -> vector<8x256xf32>
    %47 = vector.broadcast %0 : vector<1x256xf32> to vector<8x256xf32>
    %48 = arith.mulf %46, %47 : vector<8x256xf32>
    %c16_i32_20 = arith.constant 16 : i32
    %49 = tpu.dynamic_rotate %43 by %c16_i32_20 dim 1 : vector<8x256xf32>, i32 -> vector<8x256xf32>
    %50 = vector.broadcast %1 : vector<1x256xf32> to vector<8x256xf32>
    %51 = arith.mulf %49, %50 : vector<8x256xf32>
    %c15_i32_21 = arith.constant 15 : i32
    %52 = tpu.dynamic_rotate %43 by %c15_i32_21 dim 1 : vector<8x256xf32>, i32 -> vector<8x256xf32>
    %53 = vector.broadcast %2 : vector<1x256xf32> to vector<8x256xf32>
    %54 = arith.mulf %52, %53 : vector<8x256xf32>
    %c1_i32_22 = arith.constant 1 : i32
    %55 = tpu.dynamic_rotate %43 by %c1_i32_22 dim 1 : vector<8x256xf32>, i32 -> vector<8x256xf32>
    %56 = vector.broadcast %3 : vector<1x256xf32> to vector<8x256xf32>
    %57 = arith.mulf %55, %56 : vector<8x256xf32>
    %c255_i32_23 = arith.constant 255 : i32
    %58 = tpu.dynamic_rotate %43 by %c255_i32_23 dim 1 : vector<8x256xf32>, i32 -> vector<8x256xf32>
    %59 = vector.broadcast %4 : vector<1x256xf32> to vector<8x256xf32>
    %60 = arith.mulf %58, %59 : vector<8x256xf32>
    %c241_i32_24 = arith.constant 241 : i32
    %61 = tpu.dynamic_rotate %43 by %c241_i32_24 dim 1 : vector<8x256xf32>, i32 -> vector<8x256xf32>
    %62 = vector.broadcast %5 : vector<1x256xf32> to vector<8x256xf32>
    %63 = arith.mulf %61, %62 : vector<8x256xf32>
    %c240_i32_25 = arith.constant 240 : i32
    %64 = tpu.dynamic_rotate %43 by %c240_i32_25 dim 1 : vector<8x256xf32>, i32 -> vector<8x256xf32>
    %65 = vector.broadcast %6 : vector<1x256xf32> to vector<8x256xf32>
    %66 = arith.mulf %64, %65 : vector<8x256xf32>
    %c239_i32_26 = arith.constant 239 : i32
    %67 = tpu.dynamic_rotate %43 by %c239_i32_26 dim 1 : vector<8x256xf32>, i32 -> vector<8x256xf32>
    %68 = vector.broadcast %7 : vector<1x256xf32> to vector<8x256xf32>
    %69 = arith.mulf %67, %68 : vector<8x256xf32>
    %70 = tpu.concatenate %48, %51, %54, %57, %43, %60, %63, %66, %69 in 0 : vector<8x256xf32>, vector<8x256xf32>, vector<8x256xf32>, vector<8x256xf32>, vector<8x256xf32>, vector<8x256xf32>, vector<8x256xf32>, vector<8x256xf32>, vector<8x256xf32> -> vector<72x256xf32>
    %cst_27 = arith.constant dense<0.000000e+00> : vector<8x256xf32>
    %71 = tpu.matmul %44, %70, %cst_27 {dimension_numbers = #tpu.dot_dimension_numbers<[1], [0], [0], [1], [0, 0, 1, 1], [], []>} : vector<8x72xf32>, vector<72x256xf32>, vector<8x256xf32> -> vector<8x256xf32>
    %72 = vector.broadcast %45 : vector<8x1xf32> to vector<8x256xf32>
    %73 = arith.addf %71, %72 : vector<8x256xf32>
    %74 = arith.negf %73 : vector<8x256xf32>
    %75 = math.exp %74 : vector<8x256xf32>
    %cst_28 = arith.constant 1.000000e+00 : f32
    %76 = vector.broadcast %cst_28 : f32 to vector<8x256xf32>
    %77 = arith.addf %76, %75 : vector<8x256xf32>
    %78 = arith.divf %76, %77 : vector<8x256xf32>
    %79 = arith.addf %8, %78 : vector<8x256xf32>
    %c0_29 = arith.constant 0 : index
    %c0_30 = arith.constant 0 : index
    %80 = vector.load %arg6[%c0_29, %c0_30] : memref<256x128xf32, #tpu.memory_space<vmem>>, vector<256x128xf32>
    %cst_31 = arith.constant dense<0.000000e+00> : vector<8x128xf32>
    %81 = tpu.matmul %79, %80, %cst_31 {dimension_numbers = #tpu.dot_dimension_numbers<[1], [0], [0], [1], [0, 0, 1, 1], [], []>} : vector<8x256xf32>, vector<256x128xf32>, vector<8x128xf32> -> vector<8x128xf32>
    %c0_32 = arith.constant 0 : index
    %c0_33 = arith.constant 0 : index
    %82 = vector.load %arg7[%c0_32, %c0_33] : memref<8x128xf32, #tpu.memory_space<vmem>>, vector<8x128xf32>
    %83 = arith.mulf %81, %82 : vector<8x128xf32>
    %c0_34 = arith.constant 0 : index
    %c0_35 = arith.constant 0 : index
    %84 = vector.load %arg8[%c0_34, %c0_35] : memref<2x8xf32, #tpu.memory_space<vmem>>, vector<2x8xf32>
    %cst_36 = arith.constant dense<0.000000e+00> : vector<2x128xf32>
    %85 = tpu.matmul %84, %83, %cst_36 {dimension_numbers = #tpu.dot_dimension_numbers<[1], [0], [0], [1], [0, 0, 1, 1], [], []>} : vector<2x8xf32>, vector<8x128xf32>, vector<2x128xf32> -> vector<2x128xf32>
    %86 = vector.extract_strided_slice %85 {offsets = [0, 0], sizes = [2, 32], strides = [1, 1]} : vector<2x128xf32> to vector<2x32xf32>
    %87 = vector.extract_strided_slice %85 {offsets = [0, 32], sizes = [2, 32], strides = [1, 1]} : vector<2x128xf32> to vector<2x32xf32>
    %88 = arith.addf %86, %87 : vector<2x32xf32>
    %89 = vector.extract_strided_slice %85 {offsets = [0, 64], sizes = [2, 32], strides = [1, 1]} : vector<2x128xf32> to vector<2x32xf32>
    %90 = arith.addf %88, %89 : vector<2x32xf32>
    %91 = vector.extract_strided_slice %85 {offsets = [0, 96], sizes = [2, 32], strides = [1, 1]} : vector<2x128xf32> to vector<2x32xf32>
    %92 = arith.addf %90, %91 : vector<2x32xf32>
    %c0_37 = arith.constant 0 : index
    %c0_38 = arith.constant 0 : index
    %93 = vector.load %arg9[%c0_37, %c0_38] : memref<1x32xf32, #tpu.memory_space<vmem>>, vector<1x32xf32>
    %94 = vector.broadcast %93 : vector<1x32xf32> to vector<2x32xf32>
    %95 = arith.addf %92, %94 : vector<2x32xf32>
    %c0_39 = arith.constant 0 : index
    %c0_40 = arith.constant 0 : index
    %96 = vector.load %arg10[%c0_39, %c0_40] : memref<2x32xf32, #tpu.memory_space<vmem>>, vector<2x32xf32>
    tpu.vector_store %arg10[%c0_39, %c0_40], %95 {strides = array<i32>} : memref<2x32xf32, #tpu.memory_space<vmem>>, vector<2x32xf32>,
    return
  }
}

</mosaic_0001>

<llo_original>
// kernel: bottleneck_ae_forward.1
$region0: #{bottleneck_ae_forward.1}
  #allocation0 [shape = 'u32[]', space=smem, size = 0x4, offset = 0x4, fixed_abs, tag = 'smem constant byte address 0x4 - core index']
  #allocation1 [shape = 'u32[72,128]{1,0:T(1,128)}', space=vmem, size = 0x9000, scoped, tag = 'internal scratch']
  %s0 = inlined_call_operand.vmem [shape: f32[8,256], index: 0, kind: input, shape index: {}]
  %s1 = inlined_call_operand.vmem [shape: f32[8,72], index: 1, kind: input, shape index: {}]
  %s2 = inlined_call_operand.vmem [shape: f32[8,1], index: 2, kind: input, shape index: {}]
  %s3 = inlined_call_operand.vmem [shape: f32[8,72], index: 3, kind: input, shape index: {}]
  %s4 = inlined_call_operand.vmem [shape: f32[8,1], index: 4, kind: input, shape index: {}]
  %s5 = inlined_call_operand.vmem [shape: f32[9,256], index: 5, kind: input, shape index: {}]
  %s6 = inlined_call_operand.hbm [shape: f32[256,128], index: 6, kind: input, shape index: {}]
  %s7 = inlined_call_operand.vmem [shape: f32[8,128], index: 7, kind: input, shape index: {}]
  %s8 = inlined_call_operand.vmem [shape: f32[2,8], index: 8, kind: input, shape index: {}]
  %s9 = inlined_call_operand.vmem [shape: f32[1,32], index: 9, kind: input, shape index: {}]
  %s10 = inlined_call_operand.hbm [shape: f32[2,32], index: 10, kind: output, shape index: {}]
  %s11 = sld [smem:[#allocation0]]
  $region54: #{bottleneck_ae_forward.1} parent=0
    _
  %s13 = ssub.s32 1, %s11
  %s14 = scalar_select 0, %s13, %s11
  $region1: #{bottleneck_ae_forward.1} parent=0
    #allocation2 [shape = 'u8[131072]{0}', space=vmem, size = 0x20000, scoped, tag = 'input window, operand 6, single buffered']
    #allocation3 [shape = 's32[1]{0}', space=sflag, size = 0x4, scoped, tag = 'scoped memory for bottleneck_ae_forward.1']
    #allocation4 [shape = 's32[1]{0}', space=sflag, size = 0x4, scoped, tag = 'scoped memory for bottleneck_ae_forward.1']
    #allocation5 [shape = 'u8[1024]{0}', space=vmem, size = 0x400, scoped, tag = 'output window, operand 0, single buffered']
    %15 = vsyncpa [#allocation3], 0
    %16 = vsyncpa [#allocation4], 0
    // Predicated region
    $region2: #{bottleneck_ae_forward.1} parent=1 // pred_check
      _
    $region3: #{bottleneck_ae_forward.1} parent=1 // pred_check_branch
      %18 = sbr.rel (0) target = $region5
    $region4: #{bottleneck_ae_forward.1} parent=1 // pred_region
      _
    $region5: #{bottleneck_ae_forward.1} parent=1 // pred_fallthru
      _
    // Predicated region
    $region6: #{bottleneck_ae_forward.1} parent=1 // pred_check
      _
    $region7: #{bottleneck_ae_forward.1} parent=1 // pred_check_branch
      %20 = sbr.rel (0) target = $region9
    $region8: #{bottleneck_ae_forward.1} parent=1 // pred_region
      _
    $region9: #{bottleneck_ae_forward.1} parent=1 // pred_fallthru
      _
    // Predicated region
    $region10: #{bottleneck_ae_forward.1} parent=1 // pred_check
      _
    $region11: #{bottleneck_ae_forward.1} parent=1 // pred_check_branch
      %22 = sbr.rel (0) target = $region13
    $region12: #{bottleneck_ae_forward.1} parent=1 // pred_region
      _
    $region13: #{bottleneck_ae_forward.1} parent=1 // pred_fallthru
      _
    // Predicated region
    $region14: #{bottleneck_ae_forward.1} parent=1 // pred_check
      _
    $region15: #{bottleneck_ae_forward.1} parent=1 // pred_check_branch
      %24 = sbr.rel (0) target = $region17
    $region16: #{bottleneck_ae_forward.1} parent=1 // pred_region
      _
    $region17: #{bottleneck_ae_forward.1} parent=1 // pred_fallthru
      _
    // Predicated region
    $region18: #{bottleneck_ae_forward.1} parent=1 // pred_check
      _
    $region19: #{bottleneck_ae_forward.1} parent=1 // pred_check_branch
      %26 = sbr.rel (0) target = $region21
    $region20: #{bottleneck_ae_forward.1} parent=1 // pred_region
      _
    $region21: #{bottleneck_ae_forward.1} parent=1 // pred_fallthru
      _
    // Predicated region
    $region22: #{bottleneck_ae_forward.1} parent=1 // pred_check
      _
    $region23: #{bottleneck_ae_forward.1} parent=1 // pred_check_branch
      %28 = sbr.rel (0) target = $region25
    $region24: #{bottleneck_ae_forward.1} parent=1 // pred_region
      _
    $region25: #{bottleneck_ae_forward.1} parent=1 // pred_fallthru
      _
    // Predicated region
    $region26: #{bottleneck_ae_forward.1} parent=1 // pred_check
      _
    $region27: #{bottleneck_ae_forward.1} parent=1 // pred_check_branch
      %30 = sbr.rel (0) target = $region29
    $region28: #{bottleneck_ae_forward.1} parent=1 // pred_region
      %32 = vsyncadd [#allocation3], 0
      %s33 = sshll.u32 %s6, 4
      %s34 = int_to_ptr.hbm [resolvable:$true] %s33
      %s35 = sshll.u32 [#allocation2], 4
      %s36 = int_to_ptr.vmem [resolvable:$true] %s35
      %41 = dma.hbm_to_vmem [thread:$0]  %s34, 4096, %s36, [#allocation3], 128, 128, 8
    $region29: #{bottleneck_ae_forward.1} parent=1 // pred_fallthru
      _
    // Predicated region
    $region30: #{bottleneck_ae_forward.1} parent=1 // pred_check
      _
    $region31: #{bottleneck_ae_forward.1} parent=1 // pred_check_branch
      %43 = sbr.rel (0) target = $region33
    $region32: #{bottleneck_ae_forward.1} parent=1 // pred_region
      _
    $region33: #{bottleneck_ae_forward.1} parent=1 // pred_fallthru
      _
    // Predicated region
    $region34: #{bottleneck_ae_forward.1} parent=1 // pred_check
      _
    $region35: #{bottleneck_ae_forward.1} parent=1 // pred_check_branch
      %45 = sbr.rel (0) target = $region37
    $region36: #{bottleneck_ae_forward.1} parent=1 // pred_region
      _
    $region37: #{bottleneck_ae_forward.1} parent=1 // pred_fallthru
      _
    // Predicated region
    $region38: #{bottleneck_ae_forward.1} parent=1 // pred_check
      _
    $region39: #{bottleneck_ae_forward.1} parent=1 // pred_check_branch
      %47 = sbr.rel (0) target = $region41
    $region40: #{bottleneck_ae_forward.1} parent=1 // pred_region
      _
    $region41: #{bottleneck_ae_forward.1} parent=1 // pred_fallthru
      _
    // Predicated region
    $region42: #{bottleneck_ae_forward.1} parent=1 // pred_check
      _
    $region43: #{bottleneck_ae_forward.1} parent=1 // pred_check_branch
      %49 = sbr.rel (0) target = $region45
    $region44: #{bottleneck_ae_forward.1} parent=1 // pred_region
      %51 = dma.done [#allocation3], 4096
    $region45: #{bottleneck_ae_forward.1} parent=1 // pred_fallthru
      _
    %v52 = vld [vmem:[%s5] ss:$8 sm:$0x3]
    %s53 = scalar_lea.vmem %s5, 1
    %v54 = vld [vmem:[%s53] ss:$8 sm:$0x3]
    %s55 = scalar_lea.vmem %s5, 2
    %v56 = vld [vmem:[%s55] ss:$8 sm:$0x3]
    %s57 = scalar_lea.vmem %s5, 3
    %v58 = vld [vmem:[%s57] ss:$8 sm:$0x3]
    %s59 = scalar_lea.vmem %s5, 5
    %v60 = vld [vmem:[%s59] ss:$8 sm:$0x3]
    %s61 = scalar_lea.vmem %s5, 6
    %v62 = vld [vmem:[%s61] ss:$8 sm:$0x3]
    %s63 = scalar_lea.vmem %s5, 7
    %v64 = vld [vmem:[%s63] ss:$8 sm:$0x3]
    %s65 = scalar_lea.vmem %s5, 16
    %v66 = vld [vmem:[%s65] ss:$8 sm:$0x3]
    %v67 = vld [vmem:[%s0] sm:$0xff]
    %v68 = vld [vmem:[%s0 + $0x8] sm:$0xff]
    %v69 = vld [vmem:[%s1] sm:$0xff]
    %v70 = vld [vmem:[%s2] sm:$0xff]
    %71 = vrot.lane.b32.xlu0 %v67, 17
    %v72 = vpop.permute.xlu0 %71
    %73 = vrot.lane.b32.xlu0 %v68, 17
    %v74 = vpop.permute.xlu0 %73
    %v75 = vlaneseq
    %v76 = vand.u32 %v75, 127
    %vm77 = vcmp.lt.s32.totalorder %v76, 17
    %v78 = vsel %vm77, %v72, %v74
    %v79 = vsel %vm77, %v74, %v72
    %v81 = vperm.slane %v52, 0
    %v82 = vperm.slane %v52, 1
    %v85 = vmul.f32 %v79, %v81
    %v86 = vmul.f32 %v78, %v82
    %87 = vrot.lane.b32.xlu0 %v67, 16
    %v88 = vpop.permute.xlu0 %87
    %89 = vrot.lane.b32.xlu0 %v68, 16
    %v90 = vpop.permute.xlu0 %89
    %vm91 = vcmp.lt.s32.totalorder %v76, 16
    %v92 = vsel %vm91, %v88, %v90
    %v93 = vsel %vm91, %v90, %v88
    %v95 = vperm.slane %v54, 0
    %v96 = vperm.slane %v54, 1
    %v99 = vmul.f32 %v93, %v95
    %v100 = vmul.f32 %v92, %v96
    %101 = vrot.lane.b32.xlu0 %v67, 15
    %v102 = vpop.permute.xlu0 %101
    %103 = vrot.lane.b32.xlu0 %v68, 15
    %v104 = vpop.permute.xlu0 %103
    %vm105 = vcmp.lt.s32.totalorder %v76, 15
    %v106 = vsel %vm105, %v102, %v104
    %v107 = vsel %vm105, %v104, %v102
    %v109 = vperm.slane %v56, 0
    %v110 = vperm.slane %v56, 1
    %v113 = vmul.f32 %v107, %v109
    %v114 = vmul.f32 %v106, %v110
    %115 = vrot.lane.b32.xlu0 %v67, 1
    %v116 = vpop.permute.xlu0 %115
    %117 = vrot.lane.b32.xlu0 %v68, 1
    %v118 = vpop.permute.xlu0 %117
    %vm119 = vcmp.lt.s32.totalorder %v76, 1
    %v120 = vsel %vm119, %v116, %v118
    %v121 = vsel %vm119, %v118, %v116
    %v123 = vperm.slane %v58, 0
    %v124 = vperm.slane %v58, 1
    %v127 = vmul.f32 %v121, %v123
    %v128 = vmul.f32 %v120, %v124
    %129 = vrot.lane.b32.xlu0 %v67, 127
    %v130 = vpop.permute.xlu0 %129
    %131 = vrot.lane.b32.xlu0 %v68, 127
    %v132 = vpop.permute.xlu0 %131
    %vm133 = vcmp.lt.s32.totalorder %v76, 127
    %v134 = vsel %vm133, %v130, %v132
    %v135 = vsel %vm133, %v132, %v130
    %v137 = vperm.slane %v60, 0
    %v138 = vperm.slane %v60, 1
    %v141 = vmul.f32 %v134, %v137
    %v142 = vmul.f32 %v135, %v138
    %143 = vrot.lane.b32.xlu0 %v67, 113
    %v144 = vpop.permute.xlu0 %143
    %145 = vrot.lane.b32.xlu0 %v68, 113
    %v146 = vpop.permute.xlu0 %145
    %vm147 = vcmp.lt.s32.totalorder %v76, 113
    %v148 = vsel %vm147, %v144, %v146
    %v149 = vsel %vm147, %v146, %v144
    %v151 = vperm.slane %v62, 0
    %v152 = vperm.slane %v62, 1
    %v155 = vmul.f32 %v148, %v151
    %v156 = vmul.f32 %v149, %v152
    %157 = vrot.lane.b32.xlu0 %v67, 112
    %v158 = vpop.permute.xlu0 %157
    %159 = vrot.lane.b32.xlu0 %v68, 112
    %v160 = vpop.permute.xlu0 %159
    %vm161 = vcmp.lt.s32.totalorder %v76, 112
    %v162 = vsel %vm161, %v158, %v160
    %v163 = vsel %vm161, %v160, %v158
    %v165 = vperm.slane %v64, 0
    %v166 = vperm.slane %v64, 1
    %v169 = vmul.f32 %v162, %v165
    %v170 = vmul.f32 %v163, %v166
    %171 = vrot.lane.b32.xlu0 %v67, 111
    %v172 = vpop.permute.xlu0 %171
    %173 = vrot.lane.b32.xlu0 %v68, 111
    %v174 = vpop.permute.xlu0 %173
    %vm175 = vcmp.lt.s32.totalorder %v76, 111
    %v176 = vsel %vm175, %v172, %v174
    %v177 = vsel %vm175, %v174, %v172
    %v179 = vperm.slane %v66, 0
    %v180 = vperm.slane %v66, 1
    %v183 = vmul.f32 %v176, %v179
    %v184 = vmul.f32 %v177, %v180
    %186 = vset.pattern.permute.xlu0 0
    %187 = vperm.xlu0 %186, %v70
    %v188 = vpop.permute.xlu0 %187
    %vm190 = vcmask 588800
    %v192 = vsel %vm190, %v69, 0
    %194 = vmatpush.msra.mxu0 0.0
    %195 = vmatpush.msra.mxu0 0.0
    %196 = vmatpush.msra.mxu0 0.0
    %197 = vmatpush.msra.mxu0 0.0
    %198 = vmatpush.msra.mxu0 0.0
    %199 = vmatpush.msra.mxu0 0.0
    %200 = vmatpush.msra.mxu0 0.0
    %201 = vmatpush.msra.mxu0 %v183
    %202 = vmatpush.msra.mxu0 %v169
    %203 = vmatpush.msra.mxu0 %v155
    %204 = vmatpush.msra.mxu0 %v141
    %205 = vmatpush.msra.mxu0 %v67
    %206 = vmatpush.msra.mxu0 %v127
    %207 = vmatpush.msra.mxu0 %v113
    %208 = vmatpush.msra.mxu0 %v99
    %209 = vmatpush.msra.mxu0 %v85
    %210 = vmatmul.f32.gmra.mxu0 %v192
    %v211 = vpop.f32.mrf.mxu0
    %v212 = vadd.f32 %v188, %v211
    %213 = vdwg.mxu0
    %214 = vmatpush.msra.mxu0 0.0
    %215 = vmatpush.msra.mxu0 0.0
    %216 = vmatpush.msra.mxu0 0.0
    %217 = vmatpush.msra.mxu0 0.0
    %218 = vmatpush.msra.mxu0 0.0
    %219 = vmatpush.msra.mxu0 0.0
    %220 = vmatpush.msra.mxu0 0.0
    %221 = vmatpush.msra.mxu0 %v184
    %222 = vmatpush.msra.mxu0 %v170
    %223 = vmatpush.msra.mxu0 %v156
    %224 = vmatpush.msra.mxu0 %v142
    %225 = vmatpush.msra.mxu0 %v68
    %226 = vmatpush.msra.mxu0 %v128
    %227 = vmatpush.msra.mxu0 %v114
    %228 = vmatpush.msra.mxu0 %v100
    %229 = vmatpush.msra.mxu0 %v86
    %230 = vmatmul.f32.gmra.mxu0 %v192
    %v231 = vpop.f32.mrf.mxu0
    %v232 = vadd.f32 %v188, %v231
    %233 = vdwg.mxu0
    %v234 = vxor.u32 %v212, 2147483648
    %v235 = vxor.u32 %v232, 2147483648
    %v236 = vmul.f32 %v234, 1.442695
    %v237 = vpow.pop %v236
    %v238 = vmul.f32 %v235, 1.442695
    %v239 = vpow.pop %v238
    %v240 = vadd.f32 %v237, 1.0
    %v241 = vadd.f32 %v239, 1.0
    %v242 = vrcp.pop %v240
    %v243 = vmul.f32 %v240, %v242
    %v244 = vsub.f32 1.0, %v243
    %v245 = vmul.f32 %v242, %v244
    %v246 = vadd.f32 %v242, %v245
    %vm247 = vweird.f32 %v240
    %vm248 = vweird.f32 %v242
    %vm249 = vmor %vm247, %vm248
    %v250 = vsel %vm249, %v242, %v246
    %v251 = vand.u32 2147483647, %v240
    %vm252 = vcmp.eq.f32.partialorder %v251, 8.507059e+37
    %v253 = vand.u32 %v240, 2147483648
    %v254 = vor.u32 1.1754944e-38, %v253
    %v255 = vsel %vm252, %v254, %v250
    %v256 = vmul.f32 1.0, %v255
    %v257 = vrcp.pop %v241
    %v258 = vmul.f32 %v241, %v257
    %v259 = vsub.f32 1.0, %v258
    %v260 = vmul.f32 %v257, %v259
    %v261 = vadd.f32 %v257, %v260
    %vm262 = vweird.f32 %v241
    %vm263 = vweird.f32 %v257
    %vm264 = vmor %vm262, %vm263
    %v265 = vsel %vm264, %v257, %v261
    %v266 = vand.u32 2147483647, %v241
    %vm267 = vcmp.eq.f32.partialorder %v266, 8.507059e+37
    %v268 = vand.u32 %v241, 2147483648
    %v269 = vor.u32 1.1754944e-38, %v268
    %v270 = vsel %vm267, %v269, %v265
    %v271 = vmul.f32 1.0, %v270
    %v272 = vld [vmem:[%s3] sm:$0xff]
    %v273 = vld [vmem:[%s4] sm:$0xff]
    %274 = vrot.lane.b32.xlu0 %v256, 17
    %v275 = vpop.permute.xlu0 %274
    %276 = vrot.lane.b32.xlu0 %v271, 17
    %v277 = vpop.permute.xlu0 %276
    %v278 = vsel %vm77, %v275, %v277
    %v279 = vsel %vm77, %v277, %v275
    %v280 = vmul.f32 %v279, %v81
    %v281 = vmul.f32 %v278, %v82
    %282 = vrot.lane.b32.xlu0 %v256, 16
    %v283 = vpop.permute.xlu0 %282
    %284 = vrot.lane.b32.xlu0 %v271, 16
    %v285 = vpop.permute.xlu0 %284
    %v286 = vsel %vm91, %v283, %v285
    %v287 = vsel %vm91, %v285, %v283
    %v288 = vmul.f32 %v287, %v95
    %v289 = vmul.f32 %v286, %v96
    %290 = vrot.lane.b32.xlu0 %v256, 15
    %v291 = vpop.permute.xlu0 %290
    %292 = vrot.lane.b32.xlu0 %v271, 15
    %v293 = vpop.permute.xlu0 %292
    %v294 = vsel %vm105, %v291, %v293
    %v295 = vsel %vm105, %v293, %v291
    %v296 = vmul.f32 %v295, %v109
    %v297 = vmul.f32 %v294, %v110
    %298 = vrot.lane.b32.xlu0 %v256, 1
    %v299 = vpop.permute.xlu0 %298
    %300 = vrot.lane.b32.xlu0 %v271, 1
    %v301 = vpop.permute.xlu0 %300
    %v302 = vsel %vm119, %v299, %v301
    %v303 = vsel %vm119, %v301, %v299
    %v304 = vmul.f32 %v303, %v123
    %v305 = vmul.f32 %v302, %v124
    %306 = vrot.lane.b32.xlu0 %v256, 127
    %v307 = vpop.permute.xlu0 %306
    %308 = vrot.lane.b32.xlu0 %v271, 127
    %v309 = vpop.permute.xlu0 %308
    %v310 = vsel %vm133, %v307, %v309
    %v311 = vsel %vm133, %v309, %v307
    %v312 = vmul.f32 %v310, %v137
    %v313 = vmul.f32 %v311, %v138
    %314 = vrot.lane.b32.xlu0 %v256, 113
    %v315 = vpop.permute.xlu0 %314
    %316 = vrot.lane.b32.xlu0 %v271, 113
    %v317 = vpop.permute.xlu0 %316
    %v318 = vsel %vm147, %v315, %v317
    %v319 = vsel %vm147, %v317, %v315
    %v320 = vmul.f32 %v318, %v151
    %v321 = vmul.f32 %v319, %v152
    %322 = vrot.lane.b32.xlu0 %v256, 112
    %v323 = vpop.permute.xlu0 %322
    %324 = vrot.lane.b32.xlu0 %v271, 112
    %v325 = vpop.permute.xlu0 %324
    %v326 = vsel %vm161, %v323, %v325
    %v327 = vsel %vm161, %v325, %v323
    %v328 = vmul.f32 %v326, %v165
    %v329 = vmul.f32 %v327, %v166
    %330 = vrot.lane.b32.xlu0 %v256, 111
    %v331 = vpop.permute.xlu0 %330
    %332 = vrot.lane.b32.xlu0 %v271, 111
    %v333 = vpop.permute.xlu0 %332
    %v334 = vsel %vm175, %v331, %v333
    %v335 = vsel %vm175, %v333, %v331
    %v336 = vmul.f32 %v334, %v179
    %v337 = vmul.f32 %v335, %v180
    %339 = vset.pattern.permute.xlu0 0
    %340 = vperm.xlu0 %339, %v273
    %v341 = vpop.permute.xlu0 %340
    %v344 = vsel %vm190, %v272, 0
    %346 = vmatpush.msra.mxu0 0.0
    %347 = vmatpush.msra.mxu0 0.0
    %348 = vmatpush.msra.mxu0 0.0
    %349 = vmatpush.msra.mxu0 0.0
    %350 = vmatpush.msra.mxu0 0.0
    %351 = vmatpush.msra.mxu0 0.0
    %352 = vmatpush.msra.mxu0 0.0
    %353 = vmatpush.msra.mxu0 %v336
    %354 = vmatpush.msra.mxu0 %v328
    %355 = vmatpush.msra.mxu0 %v320
    %356 = vmatpush.msra.mxu0 %v312
    %357 = vmatpush.msra.mxu0 %v256
    %358 = vmatpush.msra.mxu0 %v304
    %359 = vmatpush.msra.mxu0 %v296
    %360 = vmatpush.msra.mxu0 %v288
    %361 = vmatpush.msra.mxu0 %v280
    %362 = vmatmul.f32.gmra.mxu0 %v344
    %v363 = vpop.f32.mrf.mxu0
    %v364 = vadd.f32 %v341, %v363
    %365 = vdwg.mxu0
    %366 = vmatpush.msra.mxu0 0.0
    %367 = vmatpush.msra.mxu0 0.0
    %368 = vmatpush.msra.mxu0 0.0
    %369 = vmatpush.msra.mxu0 0.0
    %370 = vmatpush.msra.mxu0 0.0
    %371 = vmatpush.msra.mxu0 0.0
    %372 = vmatpush.msra.mxu0 0.0
    %373 = vmatpush.msra.mxu0 %v337
    %374 = vmatpush.msra.mxu0 %v329
    %375 = vmatpush.msra.mxu0 %v321
    %376 = vmatpush.msra.mxu0 %v313
    %377 = vmatpush.msra.mxu0 %v271
    %378 = vmatpush.msra.mxu0 %v305
    %379 = vmatpush.msra.mxu0 %v297
    %380 = vmatpush.msra.mxu0 %v289
    %381 = vmatpush.msra.mxu0 %v281
    %382 = vmatmul.f32.gmra.mxu0 %v344
    %v383 = vpop.f32.mrf.mxu0
    %v384 = vadd.f32 %v341, %v383
    %385 = vdwg.mxu0
    %v386 = vxor.u32 %v364, 2147483648
    %v387 = vxor.u32 %v384, 2147483648
    %v388 = vmul.f32 %v386, 1.442695
    %v389 = vpow.pop %v388
    %v390 = vmul.f32 %v387, 1.442695
    %v391 = vpow.pop %v390
    %v392 = vadd.f32 %v389, 1.0
    %v393 = vadd.f32 %v391, 1.0
    %v394 = vrcp.pop %v392
    %v395 = vmul.f32 %v392, %v394
    %v396 = vsub.f32 1.0, %v395
    %v397 = vmul.f32 %v394, %v396
    %v398 = vadd.f32 %v394, %v397
    %vm399 = vweird.f32 %v392
    %vm400 = vweird.f32 %v394
    %vm401 = vmor %vm399, %vm400
    %v402 = vsel %vm401, %v394, %v398
    %v403 = vand.u32 2147483647, %v392
    %vm404 = vcmp.eq.f32.partialorder %v403, 8.507059e+37
    %v405 = vand.u32 %v392, 2147483648
    %v406 = vor.u32 1.1754944e-38, %v405
    %v407 = vsel %vm404, %v406, %v402
    %v408 = vmul.f32 1.0, %v407
    %v409 = vrcp.pop %v393
    %v410 = vmul.f32 %v393, %v409
    %v411 = vsub.f32 1.0, %v410
    %v412 = vmul.f32 %v409, %v411
    %v413 = vadd.f32 %v409, %v412
    %vm414 = vweird.f32 %v393
    %vm415 = vweird.f32 %v409
    %vm416 = vmor %vm414, %vm415
    %v417 = vsel %vm416, %v409, %v413
    %v418 = vand.u32 2147483647, %v393
    %vm419 = vcmp.eq.f32.partialorder %v418, 8.507059e+37
    %v420 = vand.u32 %v393, 2147483648
    %v421 = vor.u32 1.1754944e-38, %v420
    %v422 = vsel %vm419, %v421, %v417
    %v423 = vmul.f32 1.0, %v422
    %v424 = vadd.f32 %v67, %v408
    %v425 = vadd.f32 %v68, %v423
    %v426 = vld [vmem:[#allocation2] sm:$0xff]
    %v427 = vld [vmem:[#allocation2 + $0x8] sm:$0xff]
    %v428 = vld [vmem:[#allocation2 + $0x10] sm:$0xff]
    %v429 = vld [vmem:[#allocation2 + $0x18] sm:$0xff]
    %v430 = vld [vmem:[#allocation2 + $0x20] sm:$0xff]
    %v431 = vld [vmem:[#allocation2 + $0x28] sm:$0xff]
    %v432 = vld [vmem:[#allocation2 + $0x30] sm:$0xff]
    %v433 = vld [vmem:[#allocation2 + $0x38] sm:$0xff]
    %v434 = vld [vmem:[#allocation2 + $0x40] sm:$0xff]
    %v435 = vld [vmem:[#allocation2 + $0x48] sm:$0xff]
    %v436 = vld [vmem:[#allocation2 + $0x50] sm:$0xff]
    %v437 = vld [vmem:[#allocation2 + $0x58] sm:$0xff]
    %v438 = vld [vmem:[#allocation2 + $0x60] sm:$0xff]
    %v439 = vld [vmem:[#allocation2 + $0x68] sm:$0xff]
    %v440 = vld [vmem:[#allocation2 + $0x70] sm:$0xff]
    %v441 = vld [vmem:[#allocation2 + $0x78] sm:$0xff]
    %v442 = vld [vmem:[#allocation2 + $0x80] sm:$0xff]
    %v443 = vld [vmem:[#allocation2 + $0x88] sm:$0xff]
    %v444 = vld [vmem:[#allocation2 + $0x90] sm:$0xff]
    %v445 = vld [vmem:[#allocation2 + $0x98] sm:$0xff]
    %v446 = vld [vmem:[#allocation2 + $0xa0] sm:$0xff]
    %v447 = vld [vmem:[#allocation2 + $0xa8] sm:$0xff]
    %v448 = vld [vmem:[#allocation2 + $0xb0] sm:$0xff]
    %v449 = vld [vmem:[#allocation2 + $0xb8] sm:$0xff]
    %v450 = vld [vmem:[#allocation2 + $0xc0] sm:$0xff]
    %v451 = vld [vmem:[#allocation2 + $0xc8] sm:$0xff]
    %v452 = vld [vmem:[#allocation2 + $0xd0] sm:$0xff]
    %v453 = vld [vmem:[#allocation2 + $0xd8] sm:$0xff]
    %v454 = vld [vmem:[#allocation2 + $0xe0] sm:$0xff]
    %v455 = vld [vmem:[#allocation2 + $0xe8] sm:$0xff]
    %v456 = vld [vmem:[#allocation2 + $0xf0] sm:$0xff]
    %v457 = vld [vmem:[#allocation2 + $0xf8] sm:$0xff]
    %458 = vmatpush.msra.mxu0 %v441
    %459 = vmatpush.msra.mxu0 %v440
    %460 = vmatpush.msra.mxu0 %v439
    %461 = vmatpush.msra.mxu0 %v438
    %462 = vmatpush.msra.mxu0 %v437
    %463 = vmatpush.msra.mxu0 %v436
    %464 = vmatpush.msra.mxu0 %v435
    %465 = vmatpush.msra.mxu0 %v434
    %466 = vmatpush.msra.mxu0 %v433
    %467 = vmatpush.msra.mxu0 %v432
    %468 = vmatpush.msra.mxu0 %v431
    %469 = vmatpush.msra.mxu0 %v430
    %470 = vmatpush.msra.mxu0 %v429
    %471 = vmatpush.msra.mxu0 %v428
    %472 = vmatpush.msra.mxu0 %v427
    %473 = vmatpush.msra.mxu0 %v426
    %474 = vmatmul.f32.gmra.mxu0 %v424
    %v475 = vpop.f32.mrf.mxu0
    %v476 = vadd.f32 0.0, %v475
    %477 = vdwg.mxu0
    %478 = vmatpush.msra.mxu0 %v457
    %479 = vmatpush.msra.mxu0 %v456
    %480 = vmatpush.msra.mxu0 %v455
    %481 = vmatpush.msra.mxu0 %v454
    %482 = vmatpush.msra.mxu0 %v453
    %483 = vmatpush.msra.mxu0 %v452
    %484 = vmatpush.msra.mxu0 %v451
    %485 = vmatpush.msra.mxu0 %v450
    %486 = vmatpush.msra.mxu0 %v449
    %487 = vmatpush.msra.mxu0 %v448
    %488 = vmatpush.msra.mxu0 %v447
    %489 = vmatpush.msra.mxu0 %v446
    %490 = vmatpush.msra.mxu0 %v445
    %491 = vmatpush.msra.mxu0 %v444
    %492 = vmatpush.msra.mxu0 %v443
    %493 = vmatpush.msra.mxu0 %v442
    %494 = vmatmul.f32.gmra.mxu0 %v425
    %v495 = vpop.f32.mrf.mxu0
    %v496 = vadd.f32 %v476, %v495
    %497 = vdwg.mxu0
    %v498 = vld [vmem:[%s7] sm:$0xff]
    %v499 = vmul.f32 %v496, %v498
    %v500 = vld [vmem:[%s8] sm:$0x3]
    %vm501 = vcmask 64512
    %v503 = vsel %vm501, %v500, 0
    %505 = vmatpush.msra.mxu0 0.0
    %506 = vmatpush.msra.mxu0 0.0
    %507 = vmatpush.msra.mxu0 0.0
    %508 = vmatpush.msra.mxu0 0.0
    %509 = vmatpush.msra.mxu0 0.0
    %510 = vmatpush.msra.mxu0 0.0
    %511 = vmatpush.msra.mxu0 0.0
    %512 = vmatpush.msra.mxu0 0.0
    %513 = vmatpush.msra.mxu0 0.0
    %514 = vmatpush.msra.mxu0 0.0
    %515 = vmatpush.msra.mxu0 0.0
    %516 = vmatpush.msra.mxu0 0.0
    %517 = vmatpush.msra.mxu0 0.0
    %518 = vmatpush.msra.mxu0 0.0
    %519 = vmatpush.msra.mxu0 0.0
    %520 = vmatpush.msra.mxu0 %v499
    %521 = vmatmul.f32.gmra.mxu0 %v503
    %v522 = vpop.f32.mrf.mxu0
    %v523 = vadd.f32 0.0, %v522
    %524 = vdwg.mxu0
    %526 = vrot.lane.b32.xlu0 %v523, 96
    %v527 = vpop.permute.xlu0 %526
    %v529 = vadd.f32 %v523, %v527
    %530 = vrot.lane.b32.xlu0 %v523, 64
    %v531 = vpop.permute.xlu0 %530
    %v533 = vadd.f32 %v529, %v531
    %534 = vrot.lane.b32.xlu0 %v523, 32
    %v535 = vpop.permute.xlu0 %534
    %v537 = vadd.f32 %v533, %v535
    %v538 = vld [vmem:[%s9] sm:$0x1]
    %v540 = vperm.slane %v538, 0
    %v542 = vadd.f32 %v537, %v540
    %vm543 = vcmask 254976
    %544 = vst.msk [vmem:[#allocation5] sm:$0x3] %vm543, %v542
    // Predicated region
    $region46: #{bottleneck_ae_forward.1} parent=1 // pred_check
      _
    $region47: #{bottleneck_ae_forward.1} parent=1 // pred_check_branch
      %546 = sbr.rel (0) target = $region49
    $region48: #{bottleneck_ae_forward.1} parent=1 // pred_region
      %548 = vsyncadd [#allocation4], 0
      %s550 = sshll.u32 [#allocation5], 4
      %s551 = int_to_ptr.vmem [resolvable:$true] %s550
      %s552 = sshll.u32 %s10, 4
      %s553 = int_to_ptr.hbm [resolvable:$true] %s552
      %555 = dma.vmem_to_hbm [thread:$0]  %s551, 32, %s553, [#allocation4]
    $region49: #{bottleneck_ae_forward.1} parent=1 // pred_fallthru
      _
    // Predicated region
    $region50: #{bottleneck_ae_forward.1} parent=1 // pred_check
      _
    $region51: #{bottleneck_ae_forward.1} parent=1 // pred_check_branch
      %557 = sbr.rel (0) target = $region53
    $region52: #{bottleneck_ae_forward.1} parent=1 // pred_region
      %559 = dma.done [#allocation4], 32
    $region53: #{bottleneck_ae_forward.1} parent=1 // pred_fallthru
      _
    %560 = vsyncpa [#allocation3], 1
    %561 = vsyncpa [#allocation4], 1

</llo_original>
